<compile_context>
chip_gen: v6e
topology: v6e:2x2x1
jax: 0.10.0
libtpu: 0.0.40
codegen_flags: <defaults>
</compile_context>

<pallas_src>
import jax
import jax.numpy as jnp
from jax.experimental import pallas as pl
from jax.experimental.pallas import tpu as pltpu

_LANE = 128
_SUBLANE = 8
_VMEM_BUDGET_BYTES = 8 * 1024 * 1024  # total for (in + out) double buffers


def _rnn_dropout_kernel(x_ref, m_ref, o_ref):
    # x_ref / o_ref: (TB, TT, H); m_ref: (TB, 1, H), broadcast over the seq axis.
    o_ref[...] = x_ref[...] * m_ref[...]


def _choose_tiles(B, T, H, itemsize):
    """Pick (tile_b, tile_t) so 2-in + 2-out double buffers stay within budget."""
    per_buf = _VMEM_BUDGET_BYTES // 4            # one block's worth, per buffer
    rows = max(1, per_buf // max(H * itemsize, 1))
    if rows >= T:
        tile_t = T                               # whole sequence fits per block
    else:
        tile_t = max(_SUBLANE, (rows // _SUBLANE) * _SUBLANE)  # sublane-aligned
    tile_b = 1
    block_bytes = tile_t * H * itemsize
    if tile_t == T and block_bytes < 512 * 1024:
        # Tiny per-batch slabs: group batch elements to amortize per-step cost.
        tile_b = int(min(B, max(1, per_buf // max(block_bytes, 1))))
    return tile_b, tile_t


def dropout_mask(key, shape, prob, dtype):
    """Bernoulli(1 - prob) / (1 - prob), same as dropoutMask() in the spec."""
    keep = jax.random.bernoulli(key, p=1.0 - prob, shape=shape)
    scale = jnp.asarray(1.0 / (1.0 - prob), dtype)
    return keep.astype(dtype) * scale


def rnn_dropout(x, key, prob=0.5, training=True):
    """Pallas equivalent of RNNDropout.forward. x: (B, T, H)."""
    if (not training) or prob == 0.0:
        return x
    if prob >= 1.0:
        # Everything is dropped (PyTorch would divide by zero here).
        return jnp.zeros_like(x)

    B, T, H = x.shape
    # TODO(synk): mask RNG uses jax.random in the wrapper (not pltpu.prng_*
    # in-kernel) so the kernel lowers on every backend; the heavy broadcast
    # multiply over (B, T, H) is what runs in Pallas.
    mask = dropout_mask(key, (B, 1, H), prob, x.dtype)

    # Lane-dense stores: pad the hidden (lane) axis to a multiple of 128.
    H_pad = -(-H // _LANE) * _LANE
    if H_pad != H:
        x = jnp.pad(x, ((0, 0), (0, 0), (0, H_pad - H)))
        mask = jnp.pad(mask, ((0, 0), (0, 0), (0, H_pad - H)))

    itemsize = jnp.dtype(x.dtype).itemsize
    tile_b, tile_t = _choose_tiles(B, T, H_pad, itemsize)
    grid = (pl.cdiv(B, tile_b), pl.cdiv(T, tile_t))

    out = pl.pallas_call(
        _rnn_dropout_kernel,
        out_shape=jax.ShapeDtypeStruct((B, T, H_pad), x.dtype),
        grid=grid,
        in_specs=[
            pl.BlockSpec((tile_b, tile_t, H_pad), lambda b, t: (b, t, 0)),
            pl.BlockSpec((tile_b, 1, H_pad), lambda b, t: (b, 0, 0)),
        ],
        out_specs=pl.BlockSpec((tile_b, tile_t, H_pad), lambda b, t: (b, t, 0)),
        compiler_params=pltpu.CompilerParams(
            dimension_semantics=("parallel", "parallel"),
        ),
    )(x, mask)

    if H_pad != H:
        out = out[..., :H]
    return out


if __name__ == "__main__":
    key = jax.random.PRNGKey(0)
    kx, kmask, kx2, kmask2 = jax.random.split(key, 4)

    # Shapes consistent with the module: x of shape (batch, seq, hidden).
    B, T, H = 2, 8, 128
    prob = 0.5
    x = jax.random.normal(kx, (B, T, H), dtype=jnp.float32)

    out = jax.block_until_ready(rnn_dropout(x, kmask, prob=prob, training=True))
    assert out.shape == (B, T, H)

    # Reference: identical mask (same key), plain broadcast multiply.
    mask = dropout_mask(kmask, (B, 1, H), prob, x.dtype)
    ref = x * mask
    assert jnp.allclose(out, ref, atol=1e-6), "kernel != reference"
    # Variational dropout: mask values in {0, 1/(1-p)}, shared across the T axis.
    assert jnp.all((mask == 0.0) | (mask == 2.0))

    # Eval / prob==0 paths return x unchanged.
    assert jnp.array_equal(rnn_dropout(x, kmask, prob=prob, training=False), x)
    assert jnp.array_equal(rnn_dropout(x, kmask, prob=0.0, training=True), x)

    # Non-128-aligned hidden size exercises the lane-padding path.
    B2, T2, H2 = 2, 8, 96
    x2 = jax.random.normal(kx2, (B2, T2, H2), dtype=jnp.float32)
    out2 = jax.block_until_ready(rnn_dropout(x2, kmask2, prob=prob, training=True))
    mask2 = dropout_mask(kmask2, (B2, 1, H2), prob, x2.dtype)
    assert out2.shape == (B2, T2, H2)
    assert jnp.allclose(out2, x2 * mask2, atol=1e-6)

    print("KERNEL_OK")
</pallas_src>

<mosaic_0001>
module attributes {stable_mosaic.version = 11 : i64} {
  func.func @_rnn_dropout_kernel(%arg0: i32, %arg1: i32, %arg2: memref<2x8x128xf32, #tpu.memory_space<vmem>>, %arg3: memref<2x1x128xf32, #tpu.memory_space<vmem>>, %arg4: memref<2x8x128xf32, #tpu.memory_space<vmem>>) attributes {dimension_semantics = [#tpu.dimension_semantics<parallel>, #tpu.dimension_semantics<parallel>], iteration_bounds = array<i64: 1, 1>, scalar_prefetch = 0 : i64, scratch_operands = 0 : i64, tpu.core_type = #tpu.core_type<tc>, window_params = [{transform_indices = @transform_0, window_bounds = array<i64: 2, 8, 128>}, {transform_indices = @transform_1, window_bounds = array<i64: 2, 1, 128>}, {transform_indices = @transform_2, window_bounds = array<i64: 2, 8, 128>}]} {
    %c0 = arith.constant 0 : index
    %c0_0 = arith.constant 0 : index
    %c0_1 = arith.constant 0 : index
    %0 = vector.load %arg2[%c0, %c0_0, %c0_1] : memref<2x8x128xf32, #tpu.memory_space<vmem>>, vector<2x8x128xf32>
    %c0_2 = arith.constant 0 : index
    %c0_3 = arith.constant 0 : index
    %c0_4 = arith.constant 0 : index
    %1 = vector.load %arg3[%c0_2, %c0_3, %c0_4] : memref<2x1x128xf32, #tpu.memory_space<vmem>>, vector<2x1x128xf32>
    %2 = vector.broadcast %1 : vector<2x1x128xf32> to vector<2x8x128xf32>
    %3 = arith.mulf %0, %2 : vector<2x8x128xf32>
    %c0_5 = arith.constant 0 : index
    %c0_6 = arith.constant 0 : index
    %c0_7 = arith.constant 0 : index
    %4 = vector.load %arg4[%c0_5, %c0_6, %c0_7] : memref<2x8x128xf32, #tpu.memory_space<vmem>>, vector<2x8x128xf32>
    tpu.vector_store %arg4[%c0_5, %c0_6, %c0_7], %3 {strides = array<i32>} : memref<2x8x128xf32, #tpu.memory_space<vmem>>, vector<2x8x128xf32>,
    return
  }
  func.func @transform_0(%arg0: i32, %arg1: i32) -> (i32, i32, i32) {
    %c0_i32 = arith.constant 0 : i32
    %c0_i32_0 = arith.constant 0 : i32
    return %arg0, %arg1, %c0_i32 : i32, i32, i32
  }
  func.func @transform_1(%arg0: i32, %arg1: i32) -> (i32, i32, i32) {
    %c0_i32 = arith.constant 0 : i32
    %c0_i32_0 = arith.constant 0 : i32
    %c0_i32_1 = arith.constant 0 : i32
    return %arg0, %c0_i32, %c0_i32_0 : i32, i32, i32
  }
  func.func @transform_2(%arg0: i32, %arg1: i32) -> (i32, i32, i32) {
    %c0_i32 = arith.constant 0 : i32
    %c0_i32_0 = arith.constant 0 : i32
    return %arg0, %arg1, %c0_i32 : i32, i32, i32
  }
}

</mosaic_0001>

<llo_original>
// kernel: tpu_custom_call.1
$region0: #{tpu_custom_call.1}
  #allocation0 [shape = 'u32[]', space=smem, size = 0x4, offset = 0x4, fixed_abs, tag = 'smem constant byte address 0x4 - core index']
  #allocation1 [shape = 'u32[144,128]{1,0:T(1,128)}', space=vmem, size = 0x12000, scoped, tag = 'internal scratch']
  %s0 = inlined_call_operand.hbm [shape: f32[2,8,128], index: 0, kind: input, shape index: {}]
  %s1 = inlined_call_operand.hbm [shape: f32[2,1,128], index: 1, kind: input, shape index: {}]
  %s2 = inlined_call_operand.hbm [shape: f32[2,8,128], index: 2, kind: output, shape index: {}]
  %s3 = sld [smem:[#allocation0]]
  $region26: #{tpu_custom_call.1} parent=0
    _
  %s5 = ssub.s32 1, %s3
  %s6 = scalar_select 0, %s5, %s3
  $region1: #{tpu_custom_call.1} parent=0
    #allocation2 [shape = 'u8[8192]{0}', space=vmem, size = 0x2000, scoped, tag = 'input window, operand 0, single buffered']
    #allocation3 [shape = 's32[1]{0}', space=sflag, size = 0x4, scoped, tag = 'scoped memory for tpu_custom_call.1']
    #allocation4 [shape = 's32[1]{0}', space=sflag, size = 0x4, scoped, tag = 'scoped memory for tpu_custom_call.1']
    #allocation5 [shape = 'u8[1024]{0}', space=vmem, size = 0x400, scoped, tag = 'input window, operand 1, single buffered']
    #allocation6 [shape = 's32[1]{0}', space=sflag, size = 0x4, scoped, tag = 'scoped memory for tpu_custom_call.1']
    #allocation7 [shape = 'u8[8192]{0}', space=vmem, size = 0x2000, scoped, tag = 'output window, operand 0, single buffered']
    %7 = vsyncpa [#allocation3], 0
    %8 = vsyncpa [#allocation6], 0
    %9 = vsyncpa [#allocation4], 0
    // Predicated region
    $region2: #{tpu_custom_call.1} parent=1 // pred_check
      _
    $region3: #{tpu_custom_call.1} parent=1 // pred_check_branch
      %11 = sbr.rel (0) target = $region5
    $region4: #{tpu_custom_call.1} parent=1 // pred_region
      %s13 = ssub.s32 256, 256
      %14 = vsyncadd [#allocation3], %s13
      %s15 = sshll.u32 [#allocation2], 4
      %s16 = int_to_ptr.vmem [resolvable:$true] %s15
      %21 = dma.hbm_to_vmem [thread:$0]  %s0, 256, %s16, [#allocation3], 128, 128, 8
    $region5: #{tpu_custom_call.1} parent=1 // pred_fallthru
      _
    // Predicated region
    $region6: #{tpu_custom_call.1} parent=1 // pred_check
      _
    $region7: #{tpu_custom_call.1} parent=1 // pred_check_branch
      %23 = sbr.rel (0) target = $region9
    $region8: #{tpu_custom_call.1} parent=1 // pred_region
      %s25 = ssub.s32 32, 32
      %26 = vsyncadd [#allocation6], %s25
      %s27 = sshll.u32 [#allocation5], 4
      %s28 = int_to_ptr.vmem [resolvable:$true] %s27
      %33 = dma.hbm_to_vmem [thread:$0]  %s1, 32, %s28, [#allocation6], 16, 16, 1
    $region9: #{tpu_custom_call.1} parent=1 // pred_fallthru
      _
    // Predicated region
    $region10: #{tpu_custom_call.1} parent=1 // pred_check
      _
    $region11: #{tpu_custom_call.1} parent=1 // pred_check_branch
      %35 = sbr.rel (0) target = $region13
    $region12: #{tpu_custom_call.1} parent=1 // pred_region
      %36 = dma.done [#allocation3], 256
    $region13: #{tpu_custom_call.1} parent=1 // pred_fallthru
      _
    // Predicated region
    $region14: #{tpu_custom_call.1} parent=1 // pred_check
      _
    $region15: #{tpu_custom_call.1} parent=1 // pred_check_branch
      %38 = sbr.rel (0) target = $region17
    $region16: #{tpu_custom_call.1} parent=1 // pred_region
      %39 = dma.done [#allocation6], 32
    $region17: #{tpu_custom_call.1} parent=1 // pred_fallthru
      _
    %v40 = vld [vmem:[#allocation2] sm:$0xff]
    %v41 = vld [vmem:[#allocation2 + $0x8] sm:$0xff]
    %v42 = vld [vmem:[#allocation5] sm:$0x1]
    %v43 = vld [vmem:[#allocation5 + $0x1] sm:$0x1]
    %v46 = vlaneseq
    %v47 = vshrl.u32 %v46, 7
    %v48 = vsub.s32 0, %v47
    %v49 = vrot.slane %v42, %v48
    %v50 = vlaneseq
    %v51 = vshrl.u32 %v50, 7
    %v52 = vsub.s32 0, %v51
    %v53 = vrot.slane %v43, %v52
    %v56 = vmul.f32 %v40, %v49
    %v57 = vmul.f32 %v41, %v53
    %58 = vst [vmem:[#allocation7] sm:$0xff] %v56
    %59 = vst [vmem:[#allocation7 + $0x8] sm:$0xff] %v57
    // Predicated region
    $region18: #{tpu_custom_call.1} parent=1 // pred_check
      _
    $region19: #{tpu_custom_call.1} parent=1 // pred_check_branch
      %61 = sbr.rel (0) target = $region21
    $region20: #{tpu_custom_call.1} parent=1 // pred_region
      %s63 = ssub.s32 256, 256
      %64 = vsyncadd [#allocation4], %s63
      %s65 = sshll.u32 [#allocation7], 4
      %s66 = int_to_ptr.vmem [resolvable:$true] %s65
      %71 = dma.vmem_to_hbm [thread:$0]  %s66, 256, %s2, [#allocation4], 128, 128, 8
    $region21: #{tpu_custom_call.1} parent=1 // pred_fallthru
      _
    // Predicated region
    $region22: #{tpu_custom_call.1} parent=1 // pred_check
      _
    $region23: #{tpu_custom_call.1} parent=1 // pred_check_branch
      %73 = sbr.rel (0) target = $region25
    $region24: #{tpu_custom_call.1} parent=1 // pred_region
      %74 = dma.done [#allocation4], 256
    $region25: #{tpu_custom_call.1} parent=1 // pred_fallthru
      _
    %75 = vsyncpa [#allocation3], 1
    %76 = vsyncpa [#allocation6], 1
    %77 = vsyncpa [#allocation4], 1

</llo_original>
